<compile_context>
chip_gen: v5e
topology: v5e:2x2
jax: 0.10.0
libtpu: 0.0.40
codegen_flags: <defaults>
</compile_context>

<pallas_src>
import functools

import jax
import jax.numpy as jnp
from jax import lax
from jax.experimental import pallas as pl
from jax.experimental.pallas import tpu as pltpu


# ----------------------------------------------------------------------------
# Fused kernel: depth dilated convs + LeakyReLU + 1x1 residual conv + add
# ----------------------------------------------------------------------------
def _fused_temporal_filter_kernel(x_ref, mask_ref, *refs, depth, K, dils, pads):
    # x_ref:    (C, LTOT)  f32, rows folded into lanes, zero padding between rows
    # mask_ref: (1, LTOT)  f32, 1.0 on the T valid samples of each row, 0.0 on pad
    # refs:     w_0,(F,C*K)  b_0,(F,1)  ...  w_{d-1},(F,F*K)  b_{d-1},(F,1)
    #           w_res,(F,C)  b_res,(F,1)  o_ref,(F,LTOT)
    o_ref = refs[-1]
    layer_refs = refs[:2 * depth]
    wres_ref, bres_ref = refs[2 * depth], refs[2 * depth + 1]

    x = x_ref[...]                      # (C, LTOT); padding lanes are already zero
    mask = mask_ref[...]                # (1, LTOT)
    ltot = x.shape[-1]

    h = x
    for i in range(depth):
        dil, pad_i = dils[i], pads[i]
        w = layer_refs[2 * i][...]      # (F, Cin*K), tap-major flattening
        b = layer_refs[2 * i + 1][...]  # (F, 1)

        # im2col: K dilated taps via lane rolls, stacked along the sublane axis.
        pieces = []
        for k in range(K):
            s = k * dil - pad_i                 # source offset for this tap
            shift = (-s) % ltot                 # non-negative circular roll
            pieces.append(pltpu.roll(h, shift, axis=1) if shift else h)
        slab = jnp.concatenate(pieces, axis=0)  # (Cin*K, LTOT)

        acc = jnp.dot(w, slab, preferred_element_type=jnp.float32) + b
        acc = jnp.where(acc > 0, acc, 0.01 * acc)      # LeakyReLU(0.01)
        if i != depth - 1:
            acc = acc * mask            # restore zero padding for the next layer
        h = acc

    # Residual 1x1 conv on the original input, fused into the epilogue.
    res = jnp.dot(wres_ref[...], x, preferred_element_type=jnp.float32) + bres_ref[...]
    o_ref[...] = (h + res).astype(o_ref.dtype)


# ----------------------------------------------------------------------------
# Wrapper: layout plumbing + single pallas_call
# ----------------------------------------------------------------------------
def temporal_filter_forward(x, params, depth):
    """x: (N, C, H, T) NCHW -> (N, F, H, T)."""
    N, C, H, T = x.shape
    net = params["net"]
    w_res, b_res = params["residual"]
    F, _, K = net[0][0].shape
    R = N * H

    dils = tuple(depth - i for i in range(depth))
    pads = tuple(d * (K - 1) // 2 for d in dils)
    pad_max = max(pads)

    # Row tiling: >= 2 grid steps when possible (v7x has 2 TensorCores) while
    # keeping each tile large enough to amortize the ~0.35us per-step overhead.
    R_TILE, GRID = R, 1
    if R % 2 == 0:
        R_TILE, GRID = R // 2, 2
        while R_TILE > 32 and R_TILE % 2 == 0:
            R_TILE //= 2
            GRID *= 2

    # Per-row padded length, rounded up so a tile's lane extent is a multiple of
    # 128 (unmasked lane-dense vector stores).
    TPAD = T + 2 * pad_max
    while (R_TILE * TPAD) % 128 != 0:
        TPAD += 1
    LTOT = R_TILE * TPAD

    # (N,C,H,T) -> rows (R,C,T) -> zero-pad time once -> (C, R*TPAD) flat lanes.
    x_rows = jnp.transpose(x, (0, 2, 1, 3)).reshape(R, C, T)
    xp = jnp.pad(x_rows, ((0, 0), (0, 0), (pad_max, TPAD - T - pad_max)))
    x_in = jnp.transpose(xp, (1, 0, 2)).reshape(C, R * TPAD).astype(jnp.float32)

    # Interior-lane mask (re-zeroes inter-row padding between layers).
    row_mask = jnp.zeros((1, TPAD), jnp.float32).at[:, pad_max:pad_max + T].set(1.0)
    mask = jnp.tile(row_mask, (1, R_TILE))                       # (1, LTOT)

    # im2col-folded weights: (F, Cin, K) -> (F, K*Cin), tap-major (matches kernel).
    flat = []
    in_specs = [
        pl.BlockSpec((C, LTOT), lambda g: (0, g)),
        pl.BlockSpec((1, LTOT), lambda g: (0, 0)),
    ]
    for (w, b) in net:
        Fo, Ci, Kk = w.shape
        flat.append(jnp.transpose(w, (0, 2, 1)).reshape(Fo, Kk * Ci).astype(jnp.float32))
        flat.append(b.reshape(Fo, 1).astype(jnp.float32))
        in_specs.append(pl.BlockSpec((Fo, Kk * Ci), lambda g: (0, 0)))
        in_specs.append(pl.BlockSpec((Fo, 1), lambda g: (0, 0)))
    flat.append(w_res.astype(jnp.float32))
    flat.append(b_res.reshape(F, 1).astype(jnp.float32))
    in_specs.append(pl.BlockSpec(w_res.shape, lambda g: (0, 0)))
    in_specs.append(pl.BlockSpec((F, 1), lambda g: (0, 0)))

    kernel = functools.partial(_fused_temporal_filter_kernel,
                               depth=depth, K=K, dils=dils, pads=pads)

    out = pl.pallas_call(
        kernel,
        out_shape=jax.ShapeDtypeStruct((F, GRID * LTOT), jnp.float32),
        grid=(GRID,),
        in_specs=in_specs,
        out_specs=pl.BlockSpec((F, LTOT), lambda g: (0, g)),
        compiler_params=pltpu.CompilerParams(dimension_semantics=("parallel",)),
    )(x_in, mask, *flat)

    # (F, R*TPAD) -> strip per-row padding -> (N, F, H, T).
    out = out.reshape(F, R, TPAD)[:, :, pad_max:pad_max + T]     # (F, R, T)
    return jnp.transpose(out.reshape(F, N, H, T), (1, 0, 2, 3))


# ----------------------------------------------------------------------------
# Deterministic parameter init (shapes match the PyTorch module; weight_norm folded)
# ----------------------------------------------------------------------------
def init_params(key, channels, filters, depth, temp_len):
    temp_len = temp_len + 1 - temp_len % 2
    keys = jax.random.split(key, 2 * depth + 2)
    net = []
    for i in range(depth):
        cin = channels if i == 0 else filters
        bound = 1.0 / float(cin * temp_len) ** 0.5
        v = jax.random.uniform(keys[2 * i], (filters, cin, temp_len),
                               jnp.float32, -bound, bound)
        # weight_norm: w = g * v / ||v||, g initialized to ||v|| (per out-channel)
        norm = jnp.sqrt(jnp.sum(v * v, axis=(1, 2), keepdims=True))
        w = norm * v / norm
        b = jax.random.uniform(keys[2 * i + 1], (filters,), jnp.float32,
                               -bound, bound)
        net.append((w, b))
    bound = 1.0 / float(channels) ** 0.5
    w_res = jax.random.uniform(keys[-2], (filters, channels), jnp.float32,
                               -bound, bound)
    b_res = jax.random.uniform(keys[-1], (filters,), jnp.float32, -bound, bound)
    return {"net": net, "residual": (w_res, b_res)}, temp_len


# ----------------------------------------------------------------------------
# Pure-JAX reference (lax.conv) for the correctness check
# ----------------------------------------------------------------------------
def reference_forward(x, params, depth):
    h = x
    for i in range(depth):
        dil = depth - i
        w, b = params["net"][i]
        K = w.shape[-1]
        pad = dil * (K - 1) // 2
        h = lax.conv_general_dilated(
            h, w[:, :, None, :], window_strides=(1, 1),
            padding=[(0, 0), (pad, pad)], rhs_dilation=(1, dil),
            dimension_numbers=("NCHW", "OIHW", "NCHW"),
            precision=lax.Precision.HIGHEST)
        h = h + b[None, :, None, None]
        h = jnp.where(h > 0, h, 0.01 * h)
    w_res, b_res = params["residual"]
    res = lax.conv_general_dilated(
        x, w_res[:, :, None, None], window_strides=(1, 1), padding="VALID",
        dimension_numbers=("NCHW", "OIHW", "NCHW"),
        precision=lax.Precision.HIGHEST) + b_res[None, :, None, None]
    return h + res


# ----------------------------------------------------------------------------
if __name__ == "__main__":
    N, channels, H, T = 2, 4, 8, 64
    filters, depth, temp_len = 8, 2, 5

    key = jax.random.PRNGKey(0)
    k_x, k_p = jax.random.split(key)
    x = jax.random.normal(k_x, (N, channels, H, T), jnp.float32)

    params, temp_len = init_params(k_p, channels, filters, depth, temp_len)

    out = jax.block_until_ready(temporal_filter_forward(x, params, depth))
    ref = jax.block_until_ready(reference_forward(x, params, depth))

    assert out.shape == (N, filters, H, T), out.shape
    err = float(jnp.max(jnp.abs(out - ref)))
    assert jnp.allclose(out, ref, atol=2e-4, rtol=2e-4), err

    print("KERNEL_OK")
</pallas_src>

<mosaic_0001>
module attributes {stable_mosaic.version = 11 : i64} {
  func.func @_fused_temporal_filter_kernel(%arg0: i32, %arg1: memref<4x640xf32, #tpu.memory_space<vmem>>, %arg2: memref<1x640xf32, #tpu.memory_space<vmem>>, %arg3: memref<8x20xf32, #tpu.memory_space<vmem>>, %arg4: memref<8x1xf32, #tpu.memory_space<vmem>>, %arg5: memref<8x40xf32, #tpu.memory_space<vmem>>, %arg6: memref<8x1xf32, #tpu.memory_space<vmem>>, %arg7: memref<8x4xf32, #tpu.memory_space<vmem>>, %arg8: memref<8x1xf32, #tpu.memory_space<vmem>>, %arg9: memref<8x640xf32, #tpu.memory_space<vmem>>) attributes {dimension_semantics = [#tpu.dimension_semantics<parallel>], iteration_bounds = array<i64: 2>, scalar_prefetch = 0 : i64, scratch_operands = 0 : i64, tpu.core_type = #tpu.core_type<tc>, window_params = [{transform_indices = @transform_0, window_bounds = array<i64: 4, 640>}, {pipeline_mode = #tpu.pipeline_mode<synchronous>, transform_indices = @transform_1, window_bounds = array<i64: 1, 640>}, {pipeline_mode = #tpu.pipeline_mode<synchronous>, transform_indices = @transform_2, window_bounds = array<i64: 8, 20>}, {pipeline_mode = #tpu.pipeline_mode<synchronous>, transform_indices = @transform_3, window_bounds = array<i64: 8, 1>}, {pipeline_mode = #tpu.pipeline_mode<synchronous>, transform_indices = @transform_4, window_bounds = array<i64: 8, 40>}, {pipeline_mode = #tpu.pipeline_mode<synchronous>, transform_indices = @transform_5, window_bounds = array<i64: 8, 1>}, {pipeline_mode = #tpu.pipeline_mode<synchronous>, transform_indices = @transform_6, window_bounds = array<i64: 8, 4>}, {pipeline_mode = #tpu.pipeline_mode<synchronous>, transform_indices = @transform_7, window_bounds = array<i64: 8, 1>}, {transform_indices = @transform_8, window_bounds = array<i64: 8, 640>}]} {
    %c0 = arith.constant 0 : index
    %c0_0 = arith.constant 0 : index
    %0 = vector.load %arg1[%c0, %c0_0] : memref<4x640xf32, #tpu.memory_space<vmem>>, vector<4x640xf32>
    %c0_1 = arith.constant 0 : index
    %c0_2 = arith.constant 0 : index
    %1 = vector.load %arg2[%c0_1, %c0_2] : memref<1x640xf32, #tpu.memory_space<vmem>>, vector<1x640xf32>
    %c0_3 = arith.constant 0 : index
    %c0_4 = arith.constant 0 : index
    %2 = vector.load %arg3[%c0_3, %c0_4] : memref<8x20xf32, #tpu.memory_space<vmem>>, vector<8x20xf32>
    %c0_5 = arith.constant 0 : index
    %c0_6 = arith.constant 0 : index
    %3 = vector.load %arg4[%c0_5, %c0_6] : memref<8x1xf32, #tpu.memory_space<vmem>>, vector<8x1xf32>
    %c4_i32 = arith.constant 4 : i32
    %4 = tpu.dynamic_rotate %0 by %c4_i32 dim 1 : vector<4x640xf32>, i32 -> vector<4x640xf32>
    %c2_i32 = arith.constant 2 : i32
    %5 = tpu.dynamic_rotate %0 by %c2_i32 dim 1 : vector<4x640xf32>, i32 -> vector<4x640xf32>
    %c638_i32 = arith.constant 638 : i32
    %6 = tpu.dynamic_rotate %0 by %c638_i32 dim 1 : vector<4x640xf32>, i32 -> vector<4x640xf32>
    %c636_i32 = arith.constant 636 : i32
    %7 = tpu.dynamic_rotate %0 by %c636_i32 dim 1 : vector<4x640xf32>, i32 -> vector<4x640xf32>
    %8 = tpu.concatenate %4, %5, %0, %6, %7 in 0 : vector<4x640xf32>, vector<4x640xf32>, vector<4x640xf32>, vector<4x640xf32>, vector<4x640xf32> -> vector<20x640xf32>
    %cst = arith.constant dense<0.000000e+00> : vector<8x640xf32>
    %9 = tpu.matmul %2, %8, %cst {dimension_numbers = #tpu.dot_dimension_numbers<[1], [0], [0], [1], [0, 0, 1, 1], [], []>} : vector<8x20xf32>, vector<20x640xf32>, vector<8x640xf32> -> vector<8x640xf32>
    %10 = vector.broadcast %3 : vector<8x1xf32> to vector<8x640xf32>
    %11 = arith.addf %9, %10 : vector<8x640xf32>
    %cst_7 = arith.constant 0.000000e+00 : f32
    %12 = vector.broadcast %cst_7 : f32 to vector<8x640xf32>
    %13 = arith.cmpf ogt, %11, %12 : vector<8x640xf32>
    %cst_8 = arith.constant 0.00999999977 : f32
    %14 = vector.broadcast %cst_8 : f32 to vector<8x640xf32>
    %15 = arith.mulf %14, %11 : vector<8x640xf32>
    %16 = arith.select %13, %11, %15 : vector<8x640xi1>, vector<8x640xf32>
    %17 = vector.broadcast %1 : vector<1x640xf32> to vector<8x640xf32>
    %18 = arith.mulf %16, %17 : vector<8x640xf32>
    %c0_9 = arith.constant 0 : index
    %c0_10 = arith.constant 0 : index
    %19 = vector.load %arg5[%c0_9, %c0_10] : memref<8x40xf32, #tpu.memory_space<vmem>>, vector<8x40xf32>
    %c0_11 = arith.constant 0 : index
    %c0_12 = arith.constant 0 : index
    %20 = vector.load %arg6[%c0_11, %c0_12] : memref<8x1xf32, #tpu.memory_space<vmem>>, vector<8x1xf32>
    %c2_i32_13 = arith.constant 2 : i32
    %21 = tpu.dynamic_rotate %18 by %c2_i32_13 dim 1 : vector<8x640xf32>, i32 -> vector<8x640xf32>
    %c1_i32 = arith.constant 1 : i32
    %22 = tpu.dynamic_rotate %18 by %c1_i32 dim 1 : vector<8x640xf32>, i32 -> vector<8x640xf32>
    %c639_i32 = arith.constant 639 : i32
    %23 = tpu.dynamic_rotate %18 by %c639_i32 dim 1 : vector<8x640xf32>, i32 -> vector<8x640xf32>
    %c638_i32_14 = arith.constant 638 : i32
    %24 = tpu.dynamic_rotate %18 by %c638_i32_14 dim 1 : vector<8x640xf32>, i32 -> vector<8x640xf32>
    %25 = tpu.concatenate %21, %22, %18, %23, %24 in 0 : vector<8x640xf32>, vector<8x640xf32>, vector<8x640xf32>, vector<8x640xf32>, vector<8x640xf32> -> vector<40x640xf32>
    %cst_15 = arith.constant dense<0.000000e+00> : vector<8x640xf32>
    %26 = tpu.matmul %19, %25, %cst_15 {dimension_numbers = #tpu.dot_dimension_numbers<[1], [0], [0], [1], [0, 0, 1, 1], [], []>} : vector<8x40xf32>, vector<40x640xf32>, vector<8x640xf32> -> vector<8x640xf32>
    %27 = vector.broadcast %20 : vector<8x1xf32> to vector<8x640xf32>
    %28 = arith.addf %26, %27 : vector<8x640xf32>
    %cst_16 = arith.constant 0.000000e+00 : f32
    %29 = vector.broadcast %cst_16 : f32 to vector<8x640xf32>
    %30 = arith.cmpf ogt, %28, %29 : vector<8x640xf32>
    %cst_17 = arith.constant 0.00999999977 : f32
    %31 = vector.broadcast %cst_17 : f32 to vector<8x640xf32>
    %32 = arith.mulf %31, %28 : vector<8x640xf32>
    %33 = arith.select %30, %28, %32 : vector<8x640xi1>, vector<8x640xf32>
    %c0_18 = arith.constant 0 : index
    %c0_19 = arith.constant 0 : index
    %34 = vector.load %arg7[%c0_18, %c0_19] : memref<8x4xf32, #tpu.memory_space<vmem>>, vector<8x4xf32>
    %cst_20 = arith.constant dense<0.000000e+00> : vector<8x640xf32>
    %35 = tpu.matmul %34, %0, %cst_20 {dimension_numbers = #tpu.dot_dimension_numbers<[1], [0], [0], [1], [0, 0, 1, 1], [], []>} : vector<8x4xf32>, vector<4x640xf32>, vector<8x640xf32> -> vector<8x640xf32>
    %c0_21 = arith.constant 0 : index
    %c0_22 = arith.constant 0 : index
    %36 = vector.load %arg8[%c0_21, %c0_22] : memref<8x1xf32, #tpu.memory_space<vmem>>, vector<8x1xf32>
    %37 = vector.broadcast %36 : vector<8x1xf32> to vector<8x640xf32>
    %38 = arith.addf %35, %37 : vector<8x640xf32>
    %39 = arith.addf %33, %38 : vector<8x640xf32>
    %c0_23 = arith.constant 0 : index
    %c0_24 = arith.constant 0 : index
    %40 = vector.load %arg9[%c0_23, %c0_24] : memref<8x640xf32, #tpu.memory_space<vmem>>, vector<8x640xf32>
    tpu.vector_store %arg9[%c0_23, %c0_24], %39 {strides = array<i32>} : memref<8x640xf32, #tpu.memory_space<vmem>>, vector<8x640xf32>,
    return
  }
  func.func @transform_0(%arg0: i32) -> (i32, i32) {
    %c0_i32 = arith.constant 0 : i32
    %c0_i32_0 = arith.constant 0 : i32
    return %c0_i32, %arg0 : i32, i32
  }
  func.func @transform_1(%arg0: i32) -> (i32, i32) {
    %c0_i32 = arith.constant 0 : i32
    %c0_i32_0 = arith.constant 0 : i32
    %c0_i32_1 = arith.constant 0 : i32
    return %c0_i32, %c0_i32_0 : i32, i32
  }
  func.func @transform_2(%arg0: i32) -> (i32, i32) {
    %c0_i32 = arith.constant 0 : i32
    %c0_i32_0 = arith.constant 0 : i32
    %c0_i32_1 = arith.constant 0 : i32
    return %c0_i32, %c0_i32_0 : i32, i32
  }
  func.func @transform_3(%arg0: i32) -> (i32, i32) {
    %c0_i32 = arith.constant 0 : i32
    %c0_i32_0 = arith.constant 0 : i32
    %c0_i32_1 = arith.constant 0 : i32
    return %c0_i32, %c0_i32_0 : i32, i32
  }
  func.func @transform_4(%arg0: i32) -> (i32, i32) {
    %c0_i32 = arith.constant 0 : i32
    %c0_i32_0 = arith.constant 0 : i32
    %c0_i32_1 = arith.constant 0 : i32
    return %c0_i32, %c0_i32_0 : i32, i32
  }
  func.func @transform_5(%arg0: i32) -> (i32, i32) {
    %c0_i32 = arith.constant 0 : i32
    %c0_i32_0 = arith.constant 0 : i32
    %c0_i32_1 = arith.constant 0 : i32
    return %c0_i32, %c0_i32_0 : i32, i32
  }
  func.func @transform_6(%arg0: i32) -> (i32, i32) {
    %c0_i32 = arith.constant 0 : i32
    %c0_i32_0 = arith.constant 0 : i32
    %c0_i32_1 = arith.constant 0 : i32
    return %c0_i32, %c0_i32_0 : i32, i32
  }
  func.func @transform_7(%arg0: i32) -> (i32, i32) {
    %c0_i32 = arith.constant 0 : i32
    %c0_i32_0 = arith.constant 0 : i32
    %c0_i32_1 = arith.constant 0 : i32
    return %c0_i32, %c0_i32_0 : i32, i32
  }
  func.func @transform_8(%arg0: i32) -> (i32, i32) {
    %c0_i32 = arith.constant 0 : i32
    %c0_i32_0 = arith.constant 0 : i32
    return %c0_i32, %arg0 : i32, i32
  }
}

</mosaic_0001>

<llo_original>
// kernel: tpu_custom_call.1
$region0: #{tpu_custom_call.1}
  #allocation0 [shape = 'u32[]', space=smem, size = 0x4, offset = 0x4, fixed_abs, tag = 'smem constant byte address 0x4 - core index']
  #allocation1 [shape = 'u32[72,128]{1,0:T(1,128)}', space=vmem, size = 0x9000, scoped, tag = 'internal scratch']
  %s0 = inlined_call_operand.hbm [shape: f32[4,1280], index: 0, kind: input, shape index: {}]
  %s1 = inlined_call_operand.vmem [shape: f32[1,640], index: 1, kind: input, shape index: {}]
  %s2 = inlined_call_operand.vmem [shape: f32[8,20], index: 2, kind: input, shape index: {}]
  %s3 = inlined_call_operand.vmem [shape: f32[8,1], index: 3, kind: input, shape index: {}]
  %s4 = inlined_call_operand.vmem [shape: f32[8,40], index: 4, kind: input, shape index: {}]
  %s5 = inlined_call_operand.vmem [shape: f32[8,1], index: 5, kind: input, shape index: {}]
  %s6 = inlined_call_operand.vmem [shape: f32[8,4], index: 6, kind: input, shape index: {}]
  %s7 = inlined_call_operand.vmem [shape: f32[8,1], index: 7, kind: input, shape index: {}]
  %s8 = inlined_call_operand.hbm [shape: f32[8,1280], index: 8, kind: output, shape index: {}]
  %s9 = sld [smem:[#allocation0]]
  $region69: #{tpu_custom_call.1} parent=0
    _
  %s11 = ssub.s32 1, %s9
  %s12 = scalar_select 0, %s11, %s9
  $region1: #{tpu_custom_call.1} parent=0
    #allocation2 [shape = 'u8[20480]{0}', space=vmem, size = 0x5000, scoped, tag = 'input window, operand 0']
    #allocation3 [shape = 's32[2]{0}', space=sflag, size = 0x8, scoped, tag = 'scoped memory for tpu_custom_call.1']
    #allocation4 [shape = 's32[2]{0}', space=sflag, size = 0x8, scoped, tag = 'scoped memory for tpu_custom_call.1']
    #allocation5 [shape = 'u8[40960]{0}', space=vmem, size = 0xa000, scoped, tag = 'output window, operand 0']
    %13 = vsyncpa [#allocation3], 0
    %s14 = scalar_lea.sflag [#allocation3], 1
    %15 = vsyncpa %s14, 0
    %16 = vsyncpa [#allocation4], 0
    %s17 = scalar_lea.sflag [#allocation4], 1
    %18 = vsyncpa %s17, 0
    loop: start=0, step=1, limit=4
    $region2: #{tpu_custom_call.1} parent=1 // loop_pre_header
      _
    $region3: #{tpu_custom_call.1} parent=1 // loop_header
      %s20 = sphi 0, %s24
      %p21 = scmp.ge.s32.totalorder %s20, 4
      %s30 = sphi 0, %s32
      %s33 = sphi 0, %s30
      %s34 = sphi 0, %s33
      %s50 = sphi 0, %s34
      %s54 = sphi 0, %s54
      %s56 = sphi 0, %s54
      %s57 = sphi 0, %s56
      %s71 = sphi 0, %s57
      %s75 = sphi 0, %s75
      %s77 = sphi 0, %s75
      %s78 = sphi 0, %s77
      %s92 = sphi 0, %s78
      %s96 = sphi 0, %s96
      %s98 = sphi 0, %s96
      %s99 = sphi 0, %s98
      %s113 = sphi 0, %s99
      %s117 = sphi 0, %s117
      %s119 = sphi 0, %s117
      %s120 = sphi 0, %s119
      %s134 = sphi 0, %s120
      %s138 = sphi 0, %s138
      %s140 = sphi 0, %s138
      %s141 = sphi 0, %s140
      %s155 = sphi 0, %s141
      %s159 = sphi 0, %s159
      %s161 = sphi 0, %s159
      %s162 = sphi 0, %s161
      %s176 = sphi 0, %s162
      %s180 = sphi 0, %s180
      %s182 = sphi 0, %s180
      %s183 = sphi 0, %s182
      %s197 = sphi 0, %s183
      %s203 = sphi 0, %s205
      %s206 = sphi 0, %s203
      %s207 = sphi 0, %s206
      %s223 = sphi 0, %s207
    $region4: #{tpu_custom_call.1} parent=1 // loop_header_branch
      %23 = sbr.rel (%p21) target = $region8
    $region5: #{tpu_custom_call.1} parent=1 // loop_body
      %s25 = ssub.s32 %s20, 1
      %s26 = ssub.s32 %s20, 2
      %s27 = sadd.s32 %s20, 1
      %s28 = ssub.s32 %s20, %s27
      %p29 = scmp.eq.s32.totalorder %s28, 0
      %s31 = sadd.s32 %s30, 1
      %s32 = scalar_select %p29, %s30, %s31
      %p35 = pneg %p29
      %p36 = scmp.eq.s32.totalorder %s20, 1
      %p37 = por %p35, %p36
      %p38 = scmp.ne.s32.totalorder %s30, %s33
      %p39 = scmp.eq.s32.totalorder %s20, 0
      %p40 = por %p38, %p39
      %p41 = scmp.ne.s32.totalorder %s30, %s33
      %p42 = scmp.eq.s32.totalorder %s25, 1
      %p43 = por %p41, %p42
      %p44 = scmp.ne.s32.totalorder %s33, %s34
      %p45 = scmp.eq.s32.totalorder %s25, 0
      %p46 = por %p44, %p45
      %p47 = scmp.ne.s32.totalorder %s33, %s34
      %p48 = scmp.eq.s32.totalorder %s26, 1
      %p49 = por %p47, %p48
      %p51 = scmp.ne.s32.totalorder %s34, %s50
      %p52 = scmp.eq.s32.totalorder %s26, 0
      %p53 = por %p51, %p52
      %s55 = sadd.s32 %s54, 1
      %p58 = scmp.eq.s32.totalorder %s20, 1
      %p59 = scmp.ne.s32.totalorder %s54, %s56
      %p60 = scmp.eq.s32.totalorder %s20, 0
      %p61 = por %p59, %p60
      %p62 = scmp.ne.s32.totalorder %s54, %s56
      %p63 = scmp.eq.s32.totalorder %s25, 1
      %p64 = por %p62, %p63
      %p65 = scmp.ne.s32.totalorder %s56, %s57
      %p66 = scmp.eq.s32.totalorder %s25, 0
      %p67 = por %p65, %p66
      %p68 = scmp.ne.s32.totalorder %s56, %s57
      %p69 = scmp.eq.s32.totalorder %s26, 1
      %p70 = por %p68, %p69
      %p72 = scmp.ne.s32.totalorder %s57, %s71
      %p73 = scmp.eq.s32.totalorder %s26, 0
      %p74 = por %p72, %p73
      %s76 = sadd.s32 %s75, 1
      %p79 = scmp.eq.s32.totalorder %s20, 1
      %p80 = scmp.ne.s32.totalorder %s75, %s77
      %p81 = scmp.eq.s32.totalorder %s20, 0
      %p82 = por %p80, %p81
      %p83 = scmp.ne.s32.totalorder %s75, %s77
      %p84 = scmp.eq.s32.totalorder %s25, 1
      %p85 = por %p83, %p84
      %p86 = scmp.ne.s32.totalorder %s77, %s78
      %p87 = scmp.eq.s32.totalorder %s25, 0
      %p88 = por %p86, %p87
      %p89 = scmp.ne.s32.totalorder %s77, %s78
      %p90 = scmp.eq.s32.totalorder %s26, 1
      %p91 = por %p89, %p90
      %p93 = scmp.ne.s32.totalorder %s78, %s92
      %p94 = scmp.eq.s32.totalorder %s26, 0
      %p95 = por %p93, %p94
      %s97 = sadd.s32 %s96, 1
      %p100 = scmp.eq.s32.totalorder %s20, 1
      %p101 = scmp.ne.s32.totalorder %s96, %s98
      %p102 = scmp.eq.s32.totalorder %s20, 0
      %p103 = por %p101, %p102
      %p104 = scmp.ne.s32.totalorder %s96, %s98
      %p105 = scmp.eq.s32.totalorder %s25, 1
      %p106 = por %p104, %p105
      %p107 = scmp.ne.s32.totalorder %s98, %s99
      %p108 = scmp.eq.s32.totalorder %s25, 0
      %p109 = por %p107, %p108
      %p110 = scmp.ne.s32.totalorder %s98, %s99
      %p111 = scmp.eq.s32.totalorder %s26, 1
      %p112 = por %p110, %p111
      %p114 = scmp.ne.s32.totalorder %s99, %s113
      %p115 = scmp.eq.s32.totalorder %s26, 0
      %p116 = por %p114, %p115
      %s118 = sadd.s32 %s117, 1
      %p121 = scmp.eq.s32.totalorder %s20, 1
      %p122 = scmp.ne.s32.totalorder %s117, %s119
      %p123 = scmp.eq.s32.totalorder %s20, 0
      %p124 = por %p122, %p123
      %p125 = scmp.ne.s32.totalorder %s117, %s119
      %p126 = scmp.eq.s32.totalorder %s25, 1
      %p127 = por %p125, %p126
      %p128 = scmp.ne.s32.totalorder %s119, %s120
      %p129 = scmp.eq.s32.totalorder %s25, 0
      %p130 = por %p128, %p129
      %p131 = scmp.ne.s32.totalorder %s119, %s120
      %p132 = scmp.eq.s32.totalorder %s26, 1
      %p133 = por %p131, %p132
      %p135 = scmp.ne.s32.totalorder %s120, %s134
      %p136 = scmp.eq.s32.totalorder %s26, 0
      %p137 = por %p135, %p136
      %s139 = sadd.s32 %s138, 1
      %p142 = scmp.eq.s32.totalorder %s20, 1
      %p143 = scmp.ne.s32.totalorder %s138, %s140
      %p144 = scmp.eq.s32.totalorder %s20, 0
      %p145 = por %p143, %p144
      %p146 = scmp.ne.s32.totalorder %s138, %s140
      %p147 = scmp.eq.s32.totalorder %s25, 1
      %p148 = por %p146, %p147
      %p149 = scmp.ne.s32.totalorder %s140, %s141
      %p150 = scmp.eq.s32.totalorder %s25, 0
      %p151 = por %p149, %p150
      %p152 = scmp.ne.s32.totalorder %s140, %s141
      %p153 = scmp.eq.s32.totalorder %s26, 1
      %p154 = por %p152, %p153
      %p156 = scmp.ne.s32.totalorder %s141, %s155
      %p157 = scmp.eq.s32.totalorder %s26, 0
      %p158 = por %p156, %p157
      %s160 = sadd.s32 %s159, 1
      %p163 = scmp.eq.s32.totalorder %s20, 1
      %p164 = scmp.ne.s32.totalorder %s159, %s161
      %p165 = scmp.eq.s32.totalorder %s20, 0
      %p166 = por %p164, %p165
      %p167 = scmp.ne.s32.totalorder %s159, %s161
      %p168 = scmp.eq.s32.totalorder %s25, 1
      %p169 = por %p167, %p168
      %p170 = scmp.ne.s32.totalorder %s161, %s162
      %p171 = scmp.eq.s32.totalorder %s25, 0
      %p172 = por %p170, %p171
      %p173 = scmp.ne.s32.totalorder %s161, %s162
      %p174 = scmp.eq.s32.totalorder %s26, 1
      %p175 = por %p173, %p174
      %p177 = scmp.ne.s32.totalorder %s162, %s176
      %p178 = scmp.eq.s32.totalorder %s26, 0
      %p179 = por %p177, %p178
      %s181 = sadd.s32 %s180, 1
      %p184 = scmp.eq.s32.totalorder %s20, 1
      %p185 = scmp.ne.s32.totalorder %s180, %s182
      %p186 = scmp.eq.s32.totalorder %s20, 0
      %p187 = por %p185, %p186
      %p188 = scmp.ne.s32.totalorder %s180, %s182
      %p189 = scmp.eq.s32.totalorder %s25, 1
      %p190 = por %p188, %p189
      %p191 = scmp.ne.s32.totalorder %s182, %s183
      %p192 = scmp.eq.s32.totalorder %s25, 0
      %p193 = por %p191, %p192
      %p194 = scmp.ne.s32.totalorder %s182, %s183
      %p195 = scmp.eq.s32.totalorder %s26, 1
      %p196 = por %p194, %p195
      %p198 = scmp.ne.s32.totalorder %s183, %s197
      %p199 = scmp.eq.s32.totalorder %s26, 0
      %p200 = por %p198, %p199
      %s201 = ssub.s32 %s20, %s27
      %p202 = scmp.eq.s32.totalorder %s201, 0
      %s204 = sadd.s32 %s203, 1
      %s205 = scalar_select %p202, %s203, %s204
      %p208 = pneg %p202
      %p209 = scmp.eq.s32.totalorder %s20, 1
      %p210 = por %p208, %p209
      %p211 = scmp.ne.s32.totalorder %s203, %s206
      %p212 = scmp.eq.s32.totalorder %s20, 0
      %p213 = por %p211, %p212
      %p214 = scmp.ne.s32.totalorder %s203, %s206
      %p215 = scmp.eq.s32.totalorder %s25, 1
      %p216 = por %p214, %p215
      %p217 = scmp.ne.s32.totalorder %s206, %s207
      %p218 = scmp.eq.s32.totalorder %s25, 0
      %p219 = por %p217, %p218
      %p220 = scmp.ne.s32.totalorder %s206, %s207
      %p221 = scmp.eq.s32.totalorder %s26, 1
      %p222 = por %p220, %p221
      %p224 = scmp.ne.s32.totalorder %s207, %s223
      %p225 = scmp.eq.s32.totalorder %s26, 0
      %p226 = por %p224, %p225
      %p227 = scmp.le.s32.totalorder 1, %s20
      %p228 = scmp.lt.s32.totalorder %s20, 3
      %p229 = pnand %p227, %p228
      %p230 = pneg %p229
      // Predicated region
      $region9: #{tpu_custom_call.1} parent=5 // pred_check
        _
      $region10: #{tpu_custom_call.1} parent=5 // pred_check_branch
        %232 = sbr.rel (%p229) target = $region12
      $region11: #{tpu_custom_call.1} parent=5 // pred_region
        %s233 = ssub.s32 %s20, 1
        // Predicated region
        $region13: #{tpu_custom_call.1} parent=11 // pred_check
          %p234 = pneg %p67
        $region14: #{tpu_custom_call.1} parent=11 // pred_check_branch
          %236 = sbr.rel (%p234) target = $region16
        $region15: #{tpu_custom_call.1} parent=11 // pred_region
          _
        $region16: #{tpu_custom_call.1} parent=11 // pred_fallthru
          _
        // Predicated region
        $region17: #{tpu_custom_call.1} parent=11 // pred_check
          %p237 = pneg %p88
        $region18: #{tpu_custom_call.1} parent=11 // pred_check_branch
          %239 = sbr.rel (%p237) target = $region20
        $region19: #{tpu_custom_call.1} parent=11 // pred_region
          _
        $region20: #{tpu_custom_call.1} parent=11 // pred_fallthru
          _
        // Predicated region
        $region21: #{tpu_custom_call.1} parent=11 // pred_check
          %p240 = pneg %p109
        $region22: #{tpu_custom_call.1} parent=11 // pred_check_branch
          %242 = sbr.rel (%p240) target = $region24
        $region23: #{tpu_custom_call.1} parent=11 // pred_region
          _
        $region24: #{tpu_custom_call.1} parent=11 // pred_fallthru
          _
        // Predicated region
        $region25: #{tpu_custom_call.1} parent=11 // pred_check
          %p243 = pneg %p130
        $region26: #{tpu_custom_call.1} parent=11 // pred_check_branch
          %245 = sbr.rel (%p243) target = $region28
        $region27: #{tpu_custom_call.1} parent=11 // pred_region
          _
        $region28: #{tpu_custom_call.1} parent=11 // pred_fallthru
          _
        // Predicated region
        $region29: #{tpu_custom_call.1} parent=11 // pred_check
          %p246 = pneg %p151
        $region30: #{tpu_custom_call.1} parent=11 // pred_check_branch
          %248 = sbr.rel (%p246) target = $region32
        $region31: #{tpu_custom_call.1} parent=11 // pred_region
          _
        $region32: #{tpu_custom_call.1} parent=11 // pred_fallthru
          _
        // Predicated region
        $region33: #{tpu_custom_call.1} parent=11 // pred_check
          %p249 = pneg %p172
        $region34: #{tpu_custom_call.1} parent=11 // pred_check_branch
          %251 = sbr.rel (%p249) target = $region36
        $region35: #{tpu_custom_call.1} parent=11 // pred_region
          _
        $region36: #{tpu_custom_call.1} parent=11 // pred_fallthru
          _
        // Predicated region
        $region37: #{tpu_custom_call.1} parent=11 // pred_check
          %p252 = pneg %p193
        $region38: #{tpu_custom_call.1} parent=11 // pred_check_branch
          %254 = sbr.rel (%p252) target = $region40
        $region39: #{tpu_custom_call.1} parent=11 // pred_region
          _
        $region40: #{tpu_custom_call.1} parent=11 // pred_fallthru
          _
      $region12: #{tpu_custom_call.1} parent=5 // pred_fallthru
        _
      %p255 = scmp.lt.s32.totalorder %s20, 2
      // Predicated region
      $region41: #{tpu_custom_call.1} parent=5 // pred_check
        %p256 = pneg %p255
      $region42: #{tpu_custom_call.1} parent=5 // pred_check_branch
        %258 = sbr.rel (%p256) target = $region44
      $region43: #{tpu_custom_call.1} parent=5 // pred_region
        // Predicated region
        $region45: #{tpu_custom_call.1} parent=43 // pred_check
          %p259 = pneg %p40
        $region46: #{tpu_custom_call.1} parent=43 // pred_check_branch
          %261 = sbr.rel (%p259) target = $region48
        $region47: #{tpu_custom_call.1} parent=43 // pred_region
          %s262 = sand.u32 %s30, 1
          %s263 = scalar_lea.sflag [#allocation3], %s262
          %s264 = sand.u32 %s30, 1
          %s265 = smul.addr %s264, 20
          %s266 = scalar_lea.vmem [#allocation2], %s265
          %s267 = smul.u32 5, %s20
          %269 = vsyncadd %s263, 0
          %s270 = smul.addr %s267, 4
          %s271 = scalar_lea.hbm %s0, %s270
          %s273 = sshll.u32 %s271, 4
          %s274 = int_to_ptr.hbm [resolvable:$true] %s273
          %s275 = sshll.u32 %s266, 4
          %s276 = int_to_ptr.vmem [resolvable:$true] %s275
          %278 = dma.hbm_to_vmem [thread:$0]  %s274, 320, %s276, %s263
        $region48: #{tpu_custom_call.1} parent=43 // pred_fallthru
          _
      $region44: #{tpu_custom_call.1} parent=5 // pred_fallthru
        _
      %p279 = scmp.le.s32.totalorder 1, %s20
      %p280 = scmp.lt.s32.totalorder %s20, 3
      %p281 = pnand %p279, %p280
      %p282 = pneg %p281
      // Predicated region
      $region49: #{tpu_custom_call.1} parent=5 // pred_check
        _
      $region50: #{tpu_custom_call.1} parent=5 // pred_check_branch
        %284 = sbr.rel (%p281) target = $region52
      $region51: #{tpu_custom_call.1} parent=5 // pred_region
        %s285 = ssub.s32 %s20, 1
        %s286 = sand.u32 %s33, 1
        %s287 = scalar_lea.sflag [#allocation3], %s286
        %s288 = sand.u32 %s33, 1
        %s289 = smul.addr %s288, 20
        %s290 = scalar_lea.vmem [#allocation2], %s289
        // Predicated region
        $region53: #{tpu_custom_call.1} parent=51 // pred_check
          %p291 = pneg %p46
        $region54: #{tpu_custom_call.1} parent=51 // pred_check_branch
          %293 = sbr.rel (%p291) target = $region56
        $region55: #{tpu_custom_call.1} parent=51 // pred_region
          %295 = dma.done %s287, 320
        $region56: #{tpu_custom_call.1} parent=51 // pred_fallthru
          _
        %s296 = sand.u32 %s33, 1
        %s297 = scalar_lea.sflag [#allocation3], %s296
        %s298 = sand.u32 %s33, 1
        %s299 = smul.addr %s298, 20
        %s300 = scalar_lea.vmem [#allocation2], %s299
        %p301 = pneg %p46
        %p302 = pneg %p43
        %p303 = pneg %p67
        %p304 = pneg %p64
        %p305 = pneg %p88
        %p306 = pneg %p85
        %p307 = pneg %p109
        %p308 = pneg %p106
        %p309 = pneg %p130
        %p310 = pneg %p127
        %p311 = pneg %p151
        %p312 = pneg %p148
        %p313 = pneg %p172
        %p314 = pneg %p169
        %p315 = pneg %p193
        %p316 = pneg %p190
        %p317 = pneg %p219
        %p318 = pneg %p216
        %s319 = sand.u32 %s206, 1
        %s320 = scalar_lea.sflag [#allocation4], %s319
        %s321 = sand.u32 %s206, 1
        %s322 = smul.addr %s321, 40
        %s323 = scalar_lea.vmem [#allocation5], %s322
        %s324 = smul.u32 5, %s25
        %s325 = smul.u32 5, %s25
        %v326 = vld [vmem:[%s290] sm:$0xff]
        %v327 = vld [vmem:[%s290 + $0x8] sm:$0xff]
        %v328 = vld [vmem:[%s290 + $0x10] sm:$0xf]
        %v329 = vld [vmem:[%s1] sm:$0x1f]
        %v330 = vld [vmem:[%s2] sm:$0xff]
        %v331 = vld [vmem:[%s3] sm:$0xff]
        %335 = vst [vmem:[#allocation1] ss:$2 sm:$0xff] %v326
        %s336 = scalar_lea.vmem [#allocation1], 16
        %337 = vst [vmem:[%s336] ss:$2 sm:$0xff] %v327
        %s338 = scalar_lea.vmem [#allocation1], 32
        %339 = vst [vmem:[%s338] ss:$2 sm:$0xff] %v328
        %v340 = vld.sshfl [vmem:[#allocation1] sm:$0xff pattern:$0x75316420]
        %v341 = vld.sshfl [vmem:[#allocation1 + $0x8] sm:$0xff pattern:$0x75316420]
        %v342 = vld.sshfl [vmem:[#allocation1 + $0x10] sm:$0xff pattern:$0x75316420]
        %v343 = vld.sshfl [vmem:[#allocation1 + $0x18] sm:$0xff pattern:$0x75316420]
        %v344 = vld.sshfl [vmem:[#allocation1 + $0x20] sm:$0xff pattern:$0x75316420]
        %350 = vrot.lane.b32.xlu0 %v340, 4
        %v351 = vpop.permute.xlu0 %350
        %352 = vrot.lane.b32.xlu0 %v341, 4
        %v353 = vpop.permute.xlu0 %352
        %354 = vrot.lane.b32.xlu0 %v342, 4
        %v355 = vpop.permute.xlu0 %354
        %356 = vrot.lane.b32.xlu0 %v343, 4
        %v357 = vpop.permute.xlu0 %356
        %358 = vrot.lane.b32.xlu0 %v344, 4
        %v359 = vpop.permute.xlu0 %358
        %v360 = vlaneseq
        %v361 = vand.u32 %v360, 127
        %vm362 = vcmp.lt.s32.totalorder %v361, 4
        %v363 = vsel %vm362, %v357, %v359
        %v364 = vsel %vm362, %v355, %v357
        %v365 = vsel %vm362, %v353, %v355
        %v366 = vsel %vm362, %v351, %v353
        %v367 = vsel %vm362, %v359, %v351
        %368 = vst [vmem:[#allocation1] ss:$2 sm:$0xff] %v326
        %s369 = scalar_lea.vmem [#allocation1], 16
        %370 = vst [vmem:[%s369] ss:$2 sm:$0xff] %v327
        %s371 = scalar_lea.vmem [#allocation1], 32
        %372 = vst [vmem:[%s371] ss:$2 sm:$0xff] %v328
        %v373 = vld.sshfl [vmem:[#allocation1] sm:$0xff pattern:$0x75316420]
        %v374 = vld.sshfl [vmem:[#allocation1 + $0x8] sm:$0xff pattern:$0x75316420]
        %v375 = vld.sshfl [vmem:[#allocation1 + $0x10] sm:$0xff pattern:$0x75316420]
        %v376 = vld.sshfl [vmem:[#allocation1 + $0x18] sm:$0xff pattern:$0x75316420]
        %v377 = vld.sshfl [vmem:[#allocation1 + $0x20] sm:$0xff pattern:$0x75316420]
        %383 = vrot.lane.b32.xlu0 %v373, 2
        %v384 = vpop.permute.xlu0 %383
        %385 = vrot.lane.b32.xlu0 %v374, 2
        %v386 = vpop.permute.xlu0 %385
        %387 = vrot.lane.b32.xlu0 %v375, 2
        %v388 = vpop.permute.xlu0 %387
        %389 = vrot.lane.b32.xlu0 %v376, 2
        %v390 = vpop.permute.xlu0 %389
        %391 = vrot.lane.b32.xlu0 %v377, 2
        %v392 = vpop.permute.xlu0 %391
        %vm393 = vcmp.lt.s32.totalorder %v361, 2
        %v394 = vsel %vm393, %v390, %v392
        %v395 = vsel %vm393, %v388, %v390
        %v396 = vsel %vm393, %v386, %v388
        %v397 = vsel %vm393, %v384, %v386
        %v398 = vsel %vm393, %v392, %v384
        %399 = vst [vmem:[#allocation1] ss:$2 sm:$0xff] %v326
        %s400 = scalar_lea.vmem [#allocation1], 16
        %401 = vst [vmem:[%s400] ss:$2 sm:$0xff] %v327
        %s402 = scalar_lea.vmem [#allocation1], 32
        %403 = vst [vmem:[%s402] ss:$2 sm:$0xff] %v328
        %v404 = vld.sshfl [vmem:[#allocation1] sm:$0xff pattern:$0x75316420]
        %v405 = vld.sshfl [vmem:[#allocation1 + $0x8] sm:$0xff pattern:$0x75316420]
        %v406 = vld.sshfl [vmem:[#allocation1 + $0x10] sm:$0xff pattern:$0x75316420]
        %v407 = vld.sshfl [vmem:[#allocation1 + $0x18] sm:$0xff pattern:$0x75316420]
        %v408 = vld.sshfl [vmem:[#allocation1 + $0x20] sm:$0xff pattern:$0x75316420]
        %414 = vrot.lane.b32.xlu0 %v404, 126
        %v415 = vpop.permute.xlu0 %414
        %416 = vrot.lane.b32.xlu0 %v405, 126
        %v417 = vpop.permute.xlu0 %416
        %418 = vrot.lane.b32.xlu0 %v406, 126
        %v419 = vpop.permute.xlu0 %418
        %420 = vrot.lane.b32.xlu0 %v407, 126
        %v421 = vpop.permute.xlu0 %420
        %422 = vrot.lane.b32.xlu0 %v408, 126
        %v423 = vpop.permute.xlu0 %422
        %vm424 = vcmp.lt.s32.totalorder %v361, 126
        %v425 = vsel %vm424, %v421, %v423
        %v426 = vsel %vm424, %v419, %v421
        %v427 = vsel %vm424, %v417, %v419
        %v428 = vsel %vm424, %v415, %v417
        %v429 = vsel %vm424, %v423, %v415
        %430 = vst [vmem:[#allocation1] ss:$2 sm:$0xff] %v326
        %s431 = scalar_lea.vmem [#allocation1], 16
        %432 = vst [vmem:[%s431] ss:$2 sm:$0xff] %v327
        %s433 = scalar_lea.vmem [#allocation1], 32
        %434 = vst [vmem:[%s433] ss:$2 sm:$0xff] %v328
        %v435 = vld.sshfl [vmem:[#allocation1] sm:$0xff pattern:$0x75316420]
        %v436 = vld.sshfl [vmem:[#allocation1 + $0x8] sm:$0xff pattern:$0x75316420]
        %v437 = vld.sshfl [vmem:[#allocation1 + $0x10] sm:$0xff pattern:$0x75316420]
        %v438 = vld.sshfl [vmem:[#allocation1 + $0x18] sm:$0xff pattern:$0x75316420]
        %v439 = vld.sshfl [vmem:[#allocation1 + $0x20] sm:$0xff pattern:$0x75316420]
        %445 = vrot.lane.b32.xlu0 %v435, 124
        %v446 = vpop.permute.xlu0 %445
        %447 = vrot.lane.b32.xlu0 %v436, 124
        %v448 = vpop.permute.xlu0 %447
        %449 = vrot.lane.b32.xlu0 %v437, 124
        %v450 = vpop.permute.xlu0 %449
        %451 = vrot.lane.b32.xlu0 %v438, 124
        %v452 = vpop.permute.xlu0 %451
        %453 = vrot.lane.b32.xlu0 %v439, 124
        %v454 = vpop.permute.xlu0 %453
        %vm455 = vcmp.lt.s32.totalorder %v361, 124
        %v456 = vsel %vm455, %v452, %v454
        %v457 = vsel %vm455, %v450, %v452
        %v458 = vsel %vm455, %v448, %v450
        %v459 = vsel %vm455, %v446, %v448
        %v460 = vsel %vm455, %v454, %v446
        %v466 = vrot.slane %v398, 4
        %v467 = vrot.slane %v397, 4
        %v468 = vrot.slane %v396, 4
        %v469 = vrot.slane %v395, 4
        %v470 = vrot.slane %v394, 4
        %476 = vst [vmem:[#allocation1] ss:$2 sm:$0xff] %v326
        %s477 = scalar_lea.vmem [#allocation1], 16
        %478 = vst [vmem:[%s477] ss:$2 sm:$0xff] %v327
        %s479 = scalar_lea.vmem [#allocation1], 32
        %480 = vst [vmem:[%s479] ss:$2 sm:$0xff] %v328
        %v481 = vld.sshfl [vmem:[#allocation1] sm:$0xff pattern:$0x75316420]
        %v482 = vld.sshfl [vmem:[#allocation1 + $0x8] sm:$0xff pattern:$0x75316420]
        %v483 = vld.sshfl [vmem:[#allocation1 + $0x10] sm:$0xff pattern:$0x75316420]
        %v484 = vld.sshfl [vmem:[#allocation1 + $0x18] sm:$0xff pattern:$0x75316420]
        %v485 = vld.sshfl [vmem:[#allocation1 + $0x20] sm:$0xff pattern:$0x75316420]
        %v496 = vrot.slane %v428, 4
        %v497 = vrot.slane %v427, 4
        %v498 = vrot.slane %v426, 4
        %v499 = vrot.slane %v425, 4
        %v500 = vrot.slane %v429, 4
        %vm506 = vcmask 1043456
        %v507 = vsel %vm506, %v367, %v466
        %v508 = vsel %vm506, %v366, %v467
        %v509 = vsel %vm506, %v365, %v468
        %v510 = vsel %vm506, %v364, %v469
        %v511 = vsel %vm506, %v363, %v470
        %v512 = vsel %vm506, %v481, %v496
        %v513 = vsel %vm506, %v482, %v497
        %v514 = vsel %vm506, %v483, %v498
        %v515 = vsel %vm506, %v484, %v499
        %v516 = vsel %vm506, %v485, %v500
        %518 = vset.pattern.permute.xlu0 0
        %519 = vperm.xlu0 %518, %v331
        %v520 = vpop.permute.xlu0 %519
        %vm522 = vcmask 162816
        %v524 = vsel %vm522, %v330, 0
        %v527 = vsel %vm506, %v459, 0
        %v530 = vsel %vm506, %v458, 0
        %v533 = vsel %vm506, %v457, 0
        %v536 = vsel %vm506, %v456, 0
        %v539 = vsel %vm506, %v460, 0
        %541 = vmatpush.msra.mxu0 0.0
        %542 = vmatpush.msra.mxu0 0.0
        %543 = vmatpush.msra.mxu0 0.0
        %544 = vmatpush.msra.mxu0 0.0
        %545 = vmatpush.msra.mxu0 0.0
        %546 = vmatpush.msra.mxu0 0.0
        %547 = vmatpush.msra.mxu0 0.0
        %548 = vmatpush.msra.mxu0 0.0
        %549 = vmatpush.msra.mxu0 0.0
        %550 = vmatpush.msra.mxu0 0.0
        %551 = vmatpush.msra.mxu0 0.0
        %552 = vmatpush.msra.mxu0 0.0
        %553 = vmatpush.msra.mxu0 0.0
        %554 = vmatpush.msra.mxu0 %v527
        %555 = vmatpush.msra.mxu0 %v512
        %556 = vmatpush.msra.mxu0 %v507
        %557 = vmatmul.f32.gmra.mxu0 %v524
        %v558 = vpop.f32.mrf.mxu0
        %v559 = vadd.f32 %v520, %v558
        %560 = vdwg.mxu0
        %561 = vmatpush.msra.mxu0 0.0
        %562 = vmatpush.msra.mxu0 0.0
        %563 = vmatpush.msra.mxu0 0.0
        %564 = vmatpush.msra.mxu0 0.0
        %565 = vmatpush.msra.mxu0 0.0
        %566 = vmatpush.msra.mxu0 0.0
        %567 = vmatpush.msra.mxu0 0.0
        %568 = vmatpush.msra.mxu0 0.0
        %569 = vmatpush.msra.mxu0 0.0
        %570 = vmatpush.msra.mxu0 0.0
        %571 = vmatpush.msra.mxu0 0.0
        %572 = vmatpush.msra.mxu0 0.0
        %573 = vmatpush.msra.mxu0 0.0
        %574 = vmatpush.msra.mxu0 %v530
        %575 = vmatpush.msra.mxu0 %v513
        %576 = vmatpush.msra.mxu0 %v508
        %577 = vmatmul.f32.gmra.mxu0 %v524
        %v578 = vpop.f32.mrf.mxu0
        %v579 = vadd.f32 %v520, %v578
        %580 = vdwg.mxu0
        %581 = vmatpush.msra.mxu0 0.0
        %582 = vmatpush.msra.mxu0 0.0
        %583 = vmatpush.msra.mxu0 0.0
        %584 = vmatpush.msra.mxu0 0.0
        %585 = vmatpush.msra.mxu0 0.0
        %586 = vmatpush.msra.mxu0 0.0
        %587 = vmatpush.msra.mxu0 0.0
        %588 = vmatpush.msra.mxu0 0.0
        %589 = vmatpush.msra.mxu0 0.0
        %590 = vmatpush.msra.mxu0 0.0
        %591 = vmatpush.msra.mxu0 0.0
        %592 = vmatpush.msra.mxu0 0.0
        %593 = vmatpush.msra.mxu0 0.0
        %594 = vmatpush.msra.mxu0 %v533
        %595 = vmatpush.msra.mxu0 %v514
        %596 = vmatpush.msra.mxu0 %v509
        %597 = vmatmul.f32.gmra.mxu0 %v524
        %v598 = vpop.f32.mrf.mxu0
        %v599 = vadd.f32 %v520, %v598
        %600 = vdwg.mxu0
        %601 = vmatpush.msra.mxu0 0.0
        %602 = vmatpush.msra.mxu0 0.0
        %603 = vmatpush.msra.mxu0 0.0
        %604 = vmatpush.msra.mxu0 0.0
        %605 = vmatpush.msra.mxu0 0.0
        %606 = vmatpush.msra.mxu0 0.0
        %607 = vmatpush.msra.mxu0 0.0
        %608 = vmatpush.msra.mxu0 0.0
        %609 = vmatpush.msra.mxu0 0.0
        %610 = vmatpush.msra.mxu0 0.0
        %611 = vmatpush.msra.mxu0 0.0
        %612 = vmatpush.msra.mxu0 0.0
        %613 = vmatpush.msra.mxu0 0.0
        %614 = vmatpush.msra.mxu0 %v536
        %615 = vmatpush.msra.mxu0 %v515
        %616 = vmatpush.msra.mxu0 %v510
        %617 = vmatmul.f32.gmra.mxu0 %v524
        %v618 = vpop.f32.mrf.mxu0
        %v619 = vadd.f32 %v520, %v618
        %620 = vdwg.mxu0
        %621 = vmatpush.msra.mxu0 0.0
        %622 = vmatpush.msra.mxu0 0.0
        %623 = vmatpush.msra.mxu0 0.0
        %624 = vmatpush.msra.mxu0 0.0
        %625 = vmatpush.msra.mxu0 0.0
        %626 = vmatpush.msra.mxu0 0.0
        %627 = vmatpush.msra.mxu0 0.0
        %628 = vmatpush.msra.mxu0 0.0
        %629 = vmatpush.msra.mxu0 0.0
        %630 = vmatpush.msra.mxu0 0.0
        %631 = vmatpush.msra.mxu0 0.0
        %632 = vmatpush.msra.mxu0 0.0
        %633 = vmatpush.msra.mxu0 0.0
        %634 = vmatpush.msra.mxu0 %v539
        %635 = vmatpush.msra.mxu0 %v516
        %636 = vmatpush.msra.mxu0 %v511
        %637 = vmatmul.f32.gmra.mxu0 %v524
        %v638 = vpop.f32.mrf.mxu0
        %v639 = vadd.f32 %v520, %v638
        %640 = vdwg.mxu0
        %vm641 = vcmp.gt.f32.partialorder %v559, 0.0
        %vm642 = vcmp.gt.f32.partialorder %v579, 0.0
        %vm643 = vcmp.gt.f32.partialorder %v599, 0.0
        %vm644 = vcmp.gt.f32.partialorder %v619, 0.0
        %vm645 = vcmp.gt.f32.partialorder %v639, 0.0
        %v646 = vmul.f32 %v559, 0.01
        %v647 = vmul.f32 %v579, 0.01
        %v648 = vmul.f32 %v599, 0.01
        %v649 = vmul.f32 %v619, 0.01
        %v650 = vmul.f32 %v639, 0.01
        %v651 = vsel %vm641, %v559, %v646
        %v652 = vsel %vm642, %v579, %v647
        %v653 = vsel %vm643, %v599, %v648
        %v654 = vsel %vm644, %v619, %v649
        %v655 = vsel %vm645, %v639, %v650
        %v657 = vperm.slane %v329, 0
        %v658 = vperm.slane %v329, 1
        %v659 = vperm.slane %v329, 2
        %v660 = vperm.slane %v329, 3
        %v661 = vperm.slane %v329, 4
        %v667 = vmul.f32 %v651, %v657
        %v668 = vmul.f32 %v652, %v658
        %v669 = vmul.f32 %v653, %v659
        %v670 = vmul.f32 %v654, %v660
        %v671 = vmul.f32 %v655, %v661
        %v672 = vld [vmem:[%s4] sm:$0xff]
        %v673 = vld [vmem:[%s5] sm:$0xff]
        %674 = vrot.lane.b32.xlu0 %v667, 2
        %v675 = vpop.permute.xlu0 %674
        %676 = vrot.lane.b32.xlu0 %v668, 2
        %v677 = vpop.permute.xlu0 %676
        %678 = vrot.lane.b32.xlu0 %v669, 2
        %v679 = vpop.permute.xlu0 %678
        %680 = vrot.lane.b32.xlu0 %v670, 2
        %v681 = vpop.permute.xlu0 %680
        %682 = vrot.lane.b32.xlu0 %v671, 2
        %v683 = vpop.permute.xlu0 %682
        %v684 = vsel %vm393, %v681, %v683
        %v685 = vsel %vm393, %v679, %v681
        %v686 = vsel %vm393, %v677, %v679
        %v687 = vsel %vm393, %v675, %v677
        %v688 = vsel %vm393, %v683, %v675
        %689 = vrot.lane.b32.xlu0 %v667, 1
        %v690 = vpop.permute.xlu0 %689
        %691 = vrot.lane.b32.xlu0 %v668, 1
        %v692 = vpop.permute.xlu0 %691
        %693 = vrot.lane.b32.xlu0 %v669, 1
        %v694 = vpop.permute.xlu0 %693
        %695 = vrot.lane.b32.xlu0 %v670, 1
        %v696 = vpop.permute.xlu0 %695
        %697 = vrot.lane.b32.xlu0 %v671, 1
        %v698 = vpop.permute.xlu0 %697
        %vm699 = vcmp.lt.s32.totalorder %v361, 1
        %v700 = vsel %vm699, %v696, %v698
        %v701 = vsel %vm699, %v694, %v696
        %v702 = vsel %vm699, %v692, %v694
        %v703 = vsel %vm699, %v690, %v692
        %v704 = vsel %vm699, %v698, %v690
        %705 = vrot.lane.b32.xlu0 %v667, 127
        %v706 = vpop.permute.xlu0 %705
        %707 = vrot.lane.b32.xlu0 %v668, 127
        %v708 = vpop.permute.xlu0 %707
        %709 = vrot.lane.b32.xlu0 %v669, 127
        %v710 = vpop.permute.xlu0 %709
        %711 = vrot.lane.b32.xlu0 %v670, 127
        %v712 = vpop.permute.xlu0 %711
        %713 = vrot.lane.b32.xlu0 %v671, 127
        %v714 = vpop.permute.xlu0 %713
        %vm715 = vcmp.lt.s32.totalorder %v361, 127
        %v716 = vsel %vm715, %v712, %v714
        %v717 = vsel %vm715, %v710, %v712
        %v718 = vsel %vm715, %v708, %v710
        %v719 = vsel %vm715, %v706, %v708
        %v720 = vsel %vm715, %v714, %v706
        %721 = vrot.lane.b32.xlu0 %v667, 126
        %v722 = vpop.permute.xlu0 %721
        %723 = vrot.lane.b32.xlu0 %v668, 126
        %v724 = vpop.permute.xlu0 %723
        %725 = vrot.lane.b32.xlu0 %v669, 126
        %v726 = vpop.permute.xlu0 %725
        %727 = vrot.lane.b32.xlu0 %v670, 126
        %v728 = vpop.permute.xlu0 %727
        %729 = vrot.lane.b32.xlu0 %v671, 126
        %v730 = vpop.permute.xlu0 %729
        %v731 = vsel %vm424, %v728, %v730
        %v732 = vsel %vm424, %v726, %v728
        %v733 = vsel %vm424, %v724, %v726
        %v734 = vsel %vm424, %v722, %v724
        %v735 = vsel %vm424, %v730, %v722
        %737 = vset.pattern.permute.xlu0 0
        %738 = vperm.xlu0 %737, %v673
        %v739 = vpop.permute.xlu0 %738
        %vm741 = vcmask 326656
        %v743 = vsel %vm741, %v672, 0
        %745 = vmatpush.msra.mxu0 0.0
        %746 = vmatpush.msra.mxu0 0.0
        %747 = vmatpush.msra.mxu0 0.0
        %748 = vmatpush.msra.mxu0 0.0
        %749 = vmatpush.msra.mxu0 0.0
        %750 = vmatpush.msra.mxu0 0.0
        %751 = vmatpush.msra.mxu0 0.0
        %752 = vmatpush.msra.mxu0 0.0
        %753 = vmatpush.msra.mxu0 0.0
        %754 = vmatpush.msra.mxu0 0.0
        %755 = vmatpush.msra.mxu0 0.0
        %756 = vmatpush.msra.mxu0 %v734
        %757 = vmatpush.msra.mxu0 %v719
        %758 = vmatpush.msra.mxu0 %v667
        %759 = vmatpush.msra.mxu0 %v704
        %760 = vmatpush.msra.mxu0 %v688
        %761 = vmatmul.f32.gmra.mxu0 %v743
        %v762 = vpop.f32.mrf.mxu0
        %v763 = vadd.f32 %v739, %v762
        %764 = vdwg.mxu0
        %765 = vmatpush.msra.mxu0 0.0
        %766 = vmatpush.msra.mxu0 0.0
        %767 = vmatpush.msra.mxu0 0.0
        %768 = vmatpush.msra.mxu0 0.0
        %769 = vmatpush.msra.mxu0 0.0
        %770 = vmatpush.msra.mxu0 0.0
        %771 = vmatpush.msra.mxu0 0.0
        %772 = vmatpush.msra.mxu0 0.0
        %773 = vmatpush.msra.mxu0 0.0
        %774 = vmatpush.msra.mxu0 0.0
        %775 = vmatpush.msra.mxu0 0.0
        %776 = vmatpush.msra.mxu0 %v733
        %777 = vmatpush.msra.mxu0 %v718
        %778 = vmatpush.msra.mxu0 %v668
        %779 = vmatpush.msra.mxu0 %v703
        %780 = vmatpush.msra.mxu0 %v687
        %781 = vmatmul.f32.gmra.mxu0 %v743
        %v782 = vpop.f32.mrf.mxu0
        %v783 = vadd.f32 %v739, %v782
        %784 = vdwg.mxu0
        %785 = vmatpush.msra.mxu0 0.0
        %786 = vmatpush.msra.mxu0 0.0
        %787 = vmatpush.msra.mxu0 0.0
        %788 = vmatpush.msra.mxu0 0.0
        %789 = vmatpush.msra.mxu0 0.0
        %790 = vmatpush.msra.mxu0 0.0
        %791 = vmatpush.msra.mxu0 0.0
        %792 = vmatpush.msra.mxu0 0.0
        %793 = vmatpush.msra.mxu0 0.0
        %794 = vmatpush.msra.mxu0 0.0
        %795 = vmatpush.msra.mxu0 0.0
        %796 = vmatpush.msra.mxu0 %v732
        %797 = vmatpush.msra.mxu0 %v717
        %798 = vmatpush.msra.mxu0 %v669
        %799 = vmatpush.msra.mxu0 %v702
        %800 = vmatpush.msra.mxu0 %v686
        %801 = vmatmul.f32.gmra.mxu0 %v743
        %v802 = vpop.f32.mrf.mxu0
        %v803 = vadd.f32 %v739, %v802
        %804 = vdwg.mxu0
        %805 = vmatpush.msra.mxu0 0.0
        %806 = vmatpush.msra.mxu0 0.0
        %807 = vmatpush.msra.mxu0 0.0
        %808 = vmatpush.msra.mxu0 0.0
        %809 = vmatpush.msra.mxu0 0.0
        %810 = vmatpush.msra.mxu0 0.0
        %811 = vmatpush.msra.mxu0 0.0
        %812 = vmatpush.msra.mxu0 0.0
        %813 = vmatpush.msra.mxu0 0.0
        %814 = vmatpush.msra.mxu0 0.0
        %815 = vmatpush.msra.mxu0 0.0
        %816 = vmatpush.msra.mxu0 %v731
        %817 = vmatpush.msra.mxu0 %v716
        %818 = vmatpush.msra.mxu0 %v670
        %819 = vmatpush.msra.mxu0 %v701
        %820 = vmatpush.msra.mxu0 %v685
        %821 = vmatmul.f32.gmra.mxu0 %v743
        %v822 = vpop.f32.mrf.mxu0
        %v823 = vadd.f32 %v739, %v822
        %824 = vdwg.mxu0
        %825 = vmatpush.msra.mxu0 0.0
        %826 = vmatpush.msra.mxu0 0.0
        %827 = vmatpush.msra.mxu0 0.0
        %828 = vmatpush.msra.mxu0 0.0
        %829 = vmatpush.msra.mxu0 0.0
        %830 = vmatpush.msra.mxu0 0.0
        %831 = vmatpush.msra.mxu0 0.0
        %832 = vmatpush.msra.mxu0 0.0
        %833 = vmatpush.msra.mxu0 0.0
        %834 = vmatpush.msra.mxu0 0.0
        %835 = vmatpush.msra.mxu0 0.0
        %836 = vmatpush.msra.mxu0 %v735
        %837 = vmatpush.msra.mxu0 %v720
        %838 = vmatpush.msra.mxu0 %v671
        %839 = vmatpush.msra.mxu0 %v700
        %840 = vmatpush.msra.mxu0 %v684
        %841 = vmatmul.f32.gmra.mxu0 %v743
        %v842 = vpop.f32.mrf.mxu0
        %v843 = vadd.f32 %v739, %v842
        %844 = vdwg.mxu0
        %vm845 = vcmp.gt.f32.partialorder %v763, 0.0
        %vm846 = vcmp.gt.f32.partialorder %v783, 0.0
        %vm847 = vcmp.gt.f32.partialorder %v803, 0.0
        %vm848 = vcmp.gt.f32.partialorder %v823, 0.0
        %vm849 = vcmp.gt.f32.partialorder %v843, 0.0
        %v850 = vmul.f32 %v763, 0.01
        %v851 = vmul.f32 %v783, 0.01
        %v852 = vmul.f32 %v803, 0.01
        %v853 = vmul.f32 %v823, 0.01
        %v854 = vmul.f32 %v843, 0.01
        %v855 = vsel %vm845, %v763, %v850
        %v856 = vsel %vm846, %v783, %v851
        %v857 = vsel %vm847, %v803, %v852
        %v858 = vsel %vm848, %v823, %v853
        %v859 = vsel %vm849, %v843, %v854
        %v860 = vld [vmem:[%s6] sm:$0xff]
        %v861 = vld [vmem:[%s7] sm:$0xff]
        %863 = vset.pattern.permute.xlu0 0
        %864 = vperm.xlu0 %863, %v861
        %v865 = vpop.permute.xlu0 %864
        %867 = vst [vmem:[#allocation1] ss:$2 sm:$0xff] %v326
        %s868 = scalar_lea.vmem [#allocation1], 16
        %869 = vst [vmem:[%s868] ss:$2 sm:$0xff] %v327
        %s870 = scalar_lea.vmem [#allocation1], 32
        %871 = vst [vmem:[%s870] ss:$2 sm:$0xff] %v328
        %v872 = vld.sshfl [vmem:[#allocation1] sm:$0xff pattern:$0x75316420]
        %v873 = vld.sshfl [vmem:[#allocation1 + $0x8] sm:$0xff pattern:$0x75316420]
        %v874 = vld.sshfl [vmem:[#allocation1 + $0x10] sm:$0xff pattern:$0x75316420]
        %v875 = vld.sshfl [vmem:[#allocation1 + $0x18] sm:$0xff pattern:$0x75316420]
        %v876 = vld.sshfl [vmem:[#allocation1 + $0x20] sm:$0xff pattern:$0x75316420]
        %vm877 = vcmask 31744
        %v879 = vsel %vm877, %v860, 0
        %v881 = vsel %vm506, %v872, 0
        %v883 = vsel %vm506, %v873, 0
        %v885 = vsel %vm506, %v874, 0
        %v887 = vsel %vm506, %v875, 0
        %v889 = vsel %vm506, %v876, 0
        %891 = vmatpush.msra.mxu0 0.0
        %892 = vmatpush.msra.mxu0 0.0
        %893 = vmatpush.msra.mxu0 0.0
        %894 = vmatpush.msra.mxu0 0.0
        %895 = vmatpush.msra.mxu0 0.0
        %896 = vmatpush.msra.mxu0 0.0
        %897 = vmatpush.msra.mxu0 0.0
        %898 = vmatpush.msra.mxu0 0.0
        %899 = vmatpush.msra.mxu0 0.0
        %900 = vmatpush.msra.mxu0 0.0
        %901 = vmatpush.msra.mxu0 0.0
        %902 = vmatpush.msra.mxu0 0.0
        %903 = vmatpush.msra.mxu0 0.0
        %904 = vmatpush.msra.mxu0 0.0
        %905 = vmatpush.msra.mxu0 0.0
        %906 = vmatpush.msra.mxu0 %v881
        %907 = vmatmul.f32.gmra.mxu0 %v879
        %v908 = vpop.f32.mrf.mxu0
        %v909 = vadd.f32 %v865, %v908
        %910 = vdwg.mxu0
        %911 = vmatpush.msra.mxu0 0.0
        %912 = vmatpush.msra.mxu0 0.0
        %913 = vmatpush.msra.mxu0 0.0
        %914 = vmatpush.msra.mxu0 0.0
        %915 = vmatpush.msra.mxu0 0.0
        %916 = vmatpush.msra.mxu0 0.0
        %917 = vmatpush.msra.mxu0 0.0
        %918 = vmatpush.msra.mxu0 0.0
        %919 = vmatpush.msra.mxu0 0.0
        %920 = vmatpush.msra.mxu0 0.0
        %921 = vmatpush.msra.mxu0 0.0
        %922 = vmatpush.msra.mxu0 0.0
        %923 = vmatpush.msra.mxu0 0.0
        %924 = vmatpush.msra.mxu0 0.0
        %925 = vmatpush.msra.mxu0 0.0
        %926 = vmatpush.msra.mxu0 %v883
        %927 = vmatmul.f32.gmra.mxu0 %v879
        %v928 = vpop.f32.mrf.mxu0
        %v929 = vadd.f32 %v865, %v928
        %930 = vdwg.mxu0
        %931 = vmatpush.msra.mxu0 0.0
        %932 = vmatpush.msra.mxu0 0.0
        %933 = vmatpush.msra.mxu0 0.0
        %934 = vmatpush.msra.mxu0 0.0
        %935 = vmatpush.msra.mxu0 0.0
        %936 = vmatpush.msra.mxu0 0.0
        %937 = vmatpush.msra.mxu0 0.0
        %938 = vmatpush.msra.mxu0 0.0
        %939 = vmatpush.msra.mxu0 0.0
        %940 = vmatpush.msra.mxu0 0.0
        %941 = vmatpush.msra.mxu0 0.0
        %942 = vmatpush.msra.mxu0 0.0
        %943 = vmatpush.msra.mxu0 0.0
        %944 = vmatpush.msra.mxu0 0.0
        %945 = vmatpush.msra.mxu0 0.0
        %946 = vmatpush.msra.mxu0 %v885
        %947 = vmatmul.f32.gmra.mxu0 %v879
        %v948 = vpop.f32.mrf.mxu0
        %v949 = vadd.f32 %v865, %v948
        %950 = vdwg.mxu0
        %951 = vmatpush.msra.mxu0 0.0
        %952 = vmatpush.msra.mxu0 0.0
        %953 = vmatpush.msra.mxu0 0.0
        %954 = vmatpush.msra.mxu0 0.0
        %955 = vmatpush.msra.mxu0 0.0
        %956 = vmatpush.msra.mxu0 0.0
        %957 = vmatpush.msra.mxu0 0.0
        %958 = vmatpush.msra.mxu0 0.0
        %959 = vmatpush.msra.mxu0 0.0
        %960 = vmatpush.msra.mxu0 0.0
        %961 = vmatpush.msra.mxu0 0.0
        %962 = vmatpush.msra.mxu0 0.0
        %963 = vmatpush.msra.mxu0 0.0
        %964 = vmatpush.msra.mxu0 0.0
        %965 = vmatpush.msra.mxu0 0.0
        %966 = vmatpush.msra.mxu0 %v887
        %967 = vmatmul.f32.gmra.mxu0 %v879
        %v968 = vpop.f32.mrf.mxu0
        %v969 = vadd.f32 %v865, %v968
        %970 = vdwg.mxu0
        %971 = vmatpush.msra.mxu0 0.0
        %972 = vmatpush.msra.mxu0 0.0
        %973 = vmatpush.msra.mxu0 0.0
        %974 = vmatpush.msra.mxu0 0.0
        %975 = vmatpush.msra.mxu0 0.0
        %976 = vmatpush.msra.mxu0 0.0
        %977 = vmatpush.msra.mxu0 0.0
        %978 = vmatpush.msra.mxu0 0.0
        %979 = vmatpush.msra.mxu0 0.0
        %980 = vmatpush.msra.mxu0 0.0
        %981 = vmatpush.msra.mxu0 0.0
        %982 = vmatpush.msra.mxu0 0.0
        %983 = vmatpush.msra.mxu0 0.0
        %984 = vmatpush.msra.mxu0 0.0
        %985 = vmatpush.msra.mxu0 0.0
        %986 = vmatpush.msra.mxu0 %v889
        %987 = vmatmul.f32.gmra.mxu0 %v879
        %v988 = vpop.f32.mrf.mxu0
        %v989 = vadd.f32 %v865, %v988
        %990 = vdwg.mxu0
        %v991 = vadd.f32 %v855, %v909
        %v992 = vadd.f32 %v856, %v929
        %v993 = vadd.f32 %v857, %v949
        %v994 = vadd.f32 %v858, %v969
        %v995 = vadd.f32 %v859, %v989
        %996 = vst [vmem:[%s323] sm:$0xff] %v991
        %997 = vst [vmem:[%s323 + $0x8] sm:$0xff] %v992
        %998 = vst [vmem:[%s323 + $0x10] sm:$0xff] %v993
        %999 = vst [vmem:[%s323 + $0x18] sm:$0xff] %v994
        %1000 = vst [vmem:[%s323 + $0x20] sm:$0xff] %v995
        %s1001 = sand.u32 %s206, 1
        %s1002 = scalar_lea.sflag [#allocation4], %s1001
        %s1003 = sand.u32 %s206, 1
        %s1004 = smul.addr %s1003, 40
        %s1005 = scalar_lea.vmem [#allocation5], %s1004
        // Predicated region
        $region57: #{tpu_custom_call.1} parent=51 // pred_check
          %p1006 = pneg %p216
        $region58: #{tpu_custom_call.1} parent=51 // pred_check_branch
          %1008 = sbr.rel (%p1006) target = $region60
        $region59: #{tpu_custom_call.1} parent=51 // pred_region
          %s1009 = smul.u32 5, %s25
          %1011 = vsyncadd %s1002, 0
          %s1012 = smul.addr %s1009, 8
          %s1013 = scalar_lea.hbm %s8, %s1012
          %s1015 = sshll.u32 %s1005, 4
          %s1016 = int_to_ptr.vmem [resolvable:$true] %s1015
          %s1017 = sshll.u32 %s1013, 4
          %s1018 = int_to_ptr.hbm [resolvable:$true] %s1017
          %1020 = dma.vmem_to_hbm [thread:$0]  %s1016, 640, %s1018, %s1002
        $region60: #{tpu_custom_call.1} parent=51 // pred_fallthru
          _
      $region52: #{tpu_custom_call.1} parent=5 // pred_fallthru
        _
      %p1021 = scmp.le.s32.totalorder 2, %s20
      // Predicated region
      $region61: #{tpu_custom_call.1} parent=5 // pred_check
        %p1022 = pneg %p1021
      $region62: #{tpu_custom_call.1} parent=5 // pred_check_branch
        %1024 = sbr.rel (%p1022) target = $region64
      $region63: #{tpu_custom_call.1} parent=5 // pred_region
        %s1025 = ssub.s32 %s20, 2
        // Predicated region
        $region65: #{tpu_custom_call.1} parent=63 // pred_check
          %p1026 = pneg %p222
        $region66: #{tpu_custom_call.1} parent=63 // pred_check_branch
          %1028 = sbr.rel (%p1026) target = $region68
        $region67: #{tpu_custom_call.1} parent=63 // pred_region
          %s1029 = sand.u32 %s207, 1
          %s1030 = scalar_lea.sflag [#allocation4], %s1029
          %s1031 = sand.u32 %s207, 1
          %s1032 = smul.addr %s1031, 40
          %s1033 = scalar_lea.vmem [#allocation5], %s1032
          %1035 = dma.done %s1030, 640
        $region68: #{tpu_custom_call.1} parent=63 // pred_fallthru
          _
      $region64: #{tpu_custom_call.1} parent=5 // pred_fallthru
        _
    $region6: #{tpu_custom_call.1} parent=1 // loop_footer
      %s24 = sadd.s32 1, %s20
    $region7: #{tpu_custom_call.1} parent=1 // loop_footer_branch
      %19 = sbr.rel target = $region3
    $region8: #{tpu_custom_call.1} parent=1 // loop_exit
      _
    %1036 = vsyncpa [#allocation3], 1
    %s1037 = scalar_lea.sflag [#allocation3], 1
    %1038 = vsyncpa %s1037, 1
    %1039 = vsyncpa [#allocation4], 1
    %s1040 = scalar_lea.sflag [#allocation4], 1
    %1041 = vsyncpa %s1040, 1

</llo_original>
